<compile_context>
chip_gen: v7x
topology: tpu7x:2x2x1
jax: 0.10.0
libtpu: 0.0.40
codegen_flags: <defaults>
</compile_context>

<pallas_src>
import numpy as np

import jax
import jax.numpy as jnp
from jax.experimental import pallas as pl
from jax.experimental.pallas import tpu as pltpu

# ---------------------------------------------------------------------------
# Problem sizes (small, consistent with the module's forward semantics)
# ---------------------------------------------------------------------------
B, C, H, W = 2, 4, 16, 16          # batch of patches, NCHW
K = C * H * W                      # flattened per-patch dim = 1024
HIDDEN = 128                       # hidden width of the synthetic extractor
FEAT_DIM = 32                      # output feature dim
LANE = 128                         # TPU lane width (output padded to this)

BRIGHTNESS_SCALE = 1.1

# Reference-side augmentation definitions (used only for the correctness check
# and to document the semantics of each fused variant).
AUGMENTATIONS = {
    "hflip": lambda x: jnp.flip(x, axis=3),        # flip width axis
    "vflip": lambda x: jnp.flip(x, axis=2),        # flip height axis
    "brightness": lambda x: x * jnp.float32(BRIGHTNESS_SCALE),
}


def _round_up(n, m):
    return ((n + m - 1) // m) * m


# ---------------------------------------------------------------------------
# Pallas kernel: fused feature extraction over ALL variants at once.
#
#   h_pre = x_bf16 @ W1_bf16                (MXU, bf16 native, f32 acc)
#   h_all = S @ h_pre                       (tiny MXU matmul: routes the raw /
#                                            hflip / vflip / norm rows to their
#                                            output positions and synthesizes
#                                            the brightness rows as 1.1 * raw)
#   h     = relu(h_all + b1)                (VPU)
#   out   = h_bf16 @ W2_bf16 + b2           (MXU, lane-dense 128-wide output)
#
# Everything fits in one VMEM block at these sizes (grid-less call).
# ---------------------------------------------------------------------------
def fused_feature_kernel(x_ref, s_ref, w1_ref, b1_ref, w2_ref, b2_ref, o_ref):
    h_pre = jnp.dot(x_ref[...], w1_ref[...],
                    preferred_element_type=jnp.float32)        # [M_IN, HIDDEN]
    # Post-matmul routing + brightness scale: touches [M_OUT, HIDDEN] only.
    h_all = jnp.dot(s_ref[...], h_pre,
                    preferred_element_type=jnp.float32)        # [M_OUT, HIDDEN]
    h = jnp.maximum(h_all + b1_ref[...], 0.0)                  # bias + ReLU (VPU)
    o = jnp.dot(h.astype(jnp.bfloat16), w2_ref[...],
                preferred_element_type=jnp.float32)            # [M_OUT, LANE]
    o_ref[...] = (o + b2_ref[...]).astype(o_ref.dtype)


def fused_extract(x_slab, s_mat, w1, b1, w2, b2, m_out_pad, n_pad):
    """Single grid-less pallas_call over the stacked/padded activation slab."""
    vmem = lambda: pl.BlockSpec(memory_space=pltpu.MemorySpace.VMEM)
    return pl.pallas_call(
        fused_feature_kernel,
        out_shape=jax.ShapeDtypeStruct((m_out_pad, n_pad), jnp.float32),
        in_specs=[vmem() for _ in range(6)],
        out_specs=vmem(),
    )(x_slab, s_mat, w1, b1, w2, b2)


def _build_routing_matrix(b, has_norm, m_in_pad, m_out_pad):
    """Constant routing/scale matrix S [m_out_pad, m_in_pad].

    Input  slab row blocks : [raw | hflip | vflip | norm?]      (m_in rows)
    Output slab row blocks : [raw | hflip | vflip | bright | norm? | pad]
    Brightness output rows reuse the raw rows scaled by 1.1 (layer 1 is linear).
    """
    s = np.zeros((m_out_pad, m_in_pad), dtype=np.float32)
    for r in range(3 * b):                      # raw / hflip / vflip: identity
        s[r, r] = 1.0
    for i in range(b):                          # brightness <- 1.1 * raw
        s[3 * b + i, i] = BRIGHTNESS_SCALE
    if has_norm:
        for i in range(b):                      # norm: identity
            s[4 * b + i, 3 * b + i] = 1.0
    return jnp.asarray(s)


# ---------------------------------------------------------------------------
# AugmentedFeatureExtractor.forward equivalent
# ---------------------------------------------------------------------------
def augmented_feature_extractor_forward(patches, params, norm_patches=None):
    w1, b1, w2, b2 = params
    b, c, h, w = patches.shape
    k = c * h * w
    feat_dim = w2.shape[1]
    has_norm = norm_patches is not None

    # Build input variant blocks in ONE stacking op (single XLA fusion).
    # Brightness is NOT materialized here: it is synthesized in-kernel.
    variants = [
        patches,                    # raw
        jnp.flip(patches, axis=3),  # hflip
        jnp.flip(patches, axis=2),  # vflip
    ]
    if has_norm:
        variants.append(norm_patches)

    m_in = len(variants) * b
    m_in_pad = _round_up(max(m_in, 8), 8)
    m_out = (len(variants) + 1) * b             # + brightness block
    m_out_pad = _round_up(max(m_out, 8), 8)

    x_all = jnp.stack(variants, axis=0).reshape(m_in, k)
    x_slab = jnp.pad(x_all, ((0, m_in_pad - m_in), (0, 0))).astype(jnp.bfloat16)

    s_mat = _build_routing_matrix(b, has_norm, m_in_pad, m_out_pad)

    # Lane-dense output: pad FEAT_DIM -> 128 so stores are unmasked.
    n_pad = _round_up(feat_dim, LANE)
    w1_bf = w1.astype(jnp.bfloat16)
    w2_bf = jnp.pad(w2, ((0, 0), (0, n_pad - feat_dim))).astype(jnp.bfloat16)
    b2_p = jnp.pad(b2, ((0, 0), (0, n_pad - feat_dim)))

    out = fused_extract(x_slab, s_mat, w1_bf, b1, w2_bf, b2_p, m_out_pad, n_pad)
    out = out[:, :feat_dim]                     # drop lane padding

    feats = out[0 * b:1 * b]
    feats_augs = {
        "hflip": out[1 * b:2 * b],
        "vflip": out[2 * b:3 * b],
        "brightness": out[3 * b:4 * b],
    }
    feats_norm = out[4 * b:5 * b] if has_norm else None
    return feats, feats_augs, feats_norm


# Pure-JAX (f32) reference for correctness checking.
def _reference_features(patches, params):
    w1, b1, w2, b2 = params
    x_flat = patches.reshape(patches.shape[0], -1)
    h = jnp.maximum(x_flat @ w1 + b1, 0.0)
    return h @ w2 + b2


if __name__ == "__main__":
    key = jax.random.PRNGKey(0)
    k_x, k_n, k_w1, k_b1, k_w2, k_b2 = jax.random.split(key, 6)

    patches = jax.random.normal(k_x, (B, C, H, W), dtype=jnp.float32)
    norm_patches = jax.random.normal(k_n, (B, C, H, W), dtype=jnp.float32)

    # Deterministic synthetic feature-extractor parameters.
    w1 = jax.random.normal(k_w1, (K, HIDDEN), dtype=jnp.float32) * 0.02
    b1 = jax.random.normal(k_b1, (1, HIDDEN), dtype=jnp.float32) * 0.02
    w2 = jax.random.normal(k_w2, (HIDDEN, FEAT_DIM), dtype=jnp.float32) * 0.02
    b2 = jax.random.normal(k_b2, (1, FEAT_DIM), dtype=jnp.float32) * 0.02
    params = (w1, b1, w2, b2)

    feats, feats_augs, feats_norm = augmented_feature_extractor_forward(
        patches, params, norm_patches
    )

    # Block on all results.
    jax.block_until_ready(feats)
    for v in feats_augs.values():
        jax.block_until_ready(v)
    jax.block_until_ready(feats_norm)

    # Correctness check against pure-JAX f32 reference. Tolerance relaxed to
    # 2e-2 because the kernel uses bf16 inputs/weights (f32 accumulation).
    ATOL, RTOL = 2e-2, 2e-2
    assert feats.shape == (B, FEAT_DIM)
    assert set(feats_augs.keys()) == set(AUGMENTATIONS.keys())
    ref = _reference_features(patches, params)
    assert jnp.allclose(feats, ref, atol=ATOL, rtol=RTOL), "raw feats mismatch"
    for name, aug in AUGMENTATIONS.items():
        ref_a = _reference_features(aug(patches), params)
        assert jnp.allclose(feats_augs[name], ref_a, atol=ATOL, rtol=RTOL), name
    ref_n = _reference_features(norm_patches, params)
    assert jnp.allclose(feats_norm, ref_n, atol=ATOL, rtol=RTOL), "norm feats mismatch"

    # norm_patches=None path still works.
    f2, fa2, fn2 = augmented_feature_extractor_forward(patches, params, None)
    jax.block_until_ready(f2)
    assert fn2 is None
    assert jnp.allclose(f2, ref, atol=ATOL, rtol=RTOL), "no-norm raw feats mismatch"

    print("KERNEL_OK")
</pallas_src>

<mosaic_0001>
module attributes {stable_mosaic.version = 11 : i64} {
  func.func @fused_feature_kernel(%arg0: memref<8x1024xbf16, #tpu.memory_space<vmem>>, %arg1: memref<16x8xf32, #tpu.memory_space<vmem>>, %arg2: memref<1024x128xbf16, #tpu.memory_space<vmem>>, %arg3: memref<1x128xf32, #tpu.memory_space<vmem>>, %arg4: memref<128x128xbf16, #tpu.memory_space<vmem>>, %arg5: memref<1x128xf32, #tpu.memory_space<vmem>>, %arg6: memref<16x128xf32, #tpu.memory_space<vmem>>) attributes {dimension_semantics = [], scalar_prefetch = 0 : i64, scratch_operands = 0 : i64, tpu.core_type = #tpu.core_type<tc>} {
    %c0 = arith.constant 0 : index
    %c0_0 = arith.constant 0 : index
    %0 = vector.load %arg0[%c0, %c0_0] : memref<8x1024xbf16, #tpu.memory_space<vmem>>, vector<8x1024xbf16>
    %c0_1 = arith.constant 0 : index
    %c0_2 = arith.constant 0 : index
    %1 = vector.load %arg2[%c0_1, %c0_2] : memref<1024x128xbf16, #tpu.memory_space<vmem>>, vector<1024x128xbf16>
    %cst = arith.constant dense<0.000000e+00> : vector<8x128xf32>
    %2 = tpu.matmul %0, %1, %cst {dimension_numbers = #tpu.dot_dimension_numbers<[1], [0], [0], [1], [0, 0, 1, 1], [], []>} : vector<8x1024xbf16>, vector<1024x128xbf16>, vector<8x128xf32> -> vector<8x128xf32>
    %c0_3 = arith.constant 0 : index
    %c0_4 = arith.constant 0 : index
    %3 = vector.load %arg1[%c0_3, %c0_4] : memref<16x8xf32, #tpu.memory_space<vmem>>, vector<16x8xf32>
    %cst_5 = arith.constant dense<0.000000e+00> : vector<16x128xf32>
    %4 = tpu.matmul %3, %2, %cst_5 {dimension_numbers = #tpu.dot_dimension_numbers<[1], [0], [0], [1], [0, 0, 1, 1], [], []>} : vector<16x8xf32>, vector<8x128xf32>, vector<16x128xf32> -> vector<16x128xf32>
    %c0_6 = arith.constant 0 : index
    %c0_7 = arith.constant 0 : index
    %5 = vector.load %arg3[%c0_6, %c0_7] : memref<1x128xf32, #tpu.memory_space<vmem>>, vector<1x128xf32>
    %6 = vector.broadcast %5 : vector<1x128xf32> to vector<16x128xf32>
    %7 = arith.addf %4, %6 : vector<16x128xf32>
    %cst_8 = arith.constant 0.000000e+00 : f32
    %8 = vector.broadcast %cst_8 : f32 to vector<16x128xf32>
    %9 = arith.maximumf %7, %8 : vector<16x128xf32>
    %10 = arith.truncf %9 : vector<16x128xf32> to vector<16x128xbf16>
    %c0_9 = arith.constant 0 : index
    %c0_10 = arith.constant 0 : index
    %11 = vector.load %arg4[%c0_9, %c0_10] : memref<128x128xbf16, #tpu.memory_space<vmem>>, vector<128x128xbf16>
    %cst_11 = arith.constant dense<0.000000e+00> : vector<16x128xf32>
    %12 = tpu.matmul %10, %11, %cst_11 {dimension_numbers = #tpu.dot_dimension_numbers<[1], [0], [0], [1], [0, 0, 1, 1], [], []>} : vector<16x128xbf16>, vector<128x128xbf16>, vector<16x128xf32> -> vector<16x128xf32>
    %c0_12 = arith.constant 0 : index
    %c0_13 = arith.constant 0 : index
    %13 = vector.load %arg5[%c0_12, %c0_13] : memref<1x128xf32, #tpu.memory_space<vmem>>, vector<1x128xf32>
    %14 = vector.broadcast %13 : vector<1x128xf32> to vector<16x128xf32>
    %15 = arith.addf %12, %14 : vector<16x128xf32>
    %c0_14 = arith.constant 0 : index
    %c0_15 = arith.constant 0 : index
    %16 = vector.load %arg6[%c0_14, %c0_15] : memref<16x128xf32, #tpu.memory_space<vmem>>, vector<16x128xf32>
    tpu.vector_store %arg6[%c0_14, %c0_15], %15 {strides = array<i32>} : memref<16x128xf32, #tpu.memory_space<vmem>>, vector<16x128xf32>,
    return
  }
}

</mosaic_0001>

<llo_original>
// kernel: tpu_custom_call.1
$region0: #{tpu_custom_call.1}
  #allocation0 [shape = 'u32[]', space=smem, size = 0x4, offset = 0x4, fixed_abs, tag = 'smem constant byte address 0x4 - core index']
  #allocation1 [shape = 'u32[144,128]{1,0:T(1,128)}', space=vmem, size = 0x12000, scoped, tag = 'internal scratch']
  %s0 = inlined_call_operand.hbm [shape: bf16[8,1024], index: 0, kind: input, shape index: {}]
  %s1 = inlined_call_operand.vmem [shape: f32[16,8], index: 1, kind: input, shape index: {}]
  %s2 = inlined_call_operand.hbm [shape: bf16[1024,128], index: 2, kind: input, shape index: {}]
  %s3 = inlined_call_operand.vmem [shape: f32[1,128], index: 3, kind: input, shape index: {}]
  %s4 = inlined_call_operand.hbm [shape: bf16[128,128], index: 4, kind: input, shape index: {}]
  %s5 = inlined_call_operand.vmem [shape: f32[1,128], index: 5, kind: input, shape index: {}]
  %s6 = inlined_call_operand.hbm [shape: f32[16,128], index: 6, kind: output, shape index: {}]
  %s7 = sld [smem:[#allocation0]]
  $region46: #{tpu_custom_call.1} parent=0
    _
  %s9 = ssub.s32 1, %s7
  %s10 = scalar_select 0, %s9, %s7
  $region1: #{tpu_custom_call.1} parent=0
    #allocation2 [shape = 'u8[16384]{0}', space=vmem, size = 0x4000, scoped, tag = 'input window, operand 0, single buffered']
    #allocation3 [shape = 's32[1]{0}', space=sflag, size = 0x4, scoped, tag = 'scoped memory for tpu_custom_call.1']
    #allocation4 [shape = 's32[1]{0}', space=sflag, size = 0x4, scoped, tag = 'scoped memory for tpu_custom_call.1']
    #allocation5 [shape = 'u8[262144]{0}', space=vmem, size = 0x40000, scoped, tag = 'input window, operand 2, single buffered']
    #allocation6 [shape = 's32[1]{0}', space=sflag, size = 0x4, scoped, tag = 'scoped memory for tpu_custom_call.1']
    #allocation7 [shape = 'u8[32768]{0}', space=vmem, size = 0x8000, scoped, tag = 'input window, operand 4, single buffered']
    #allocation8 [shape = 'u8[8192]{0}', space=vmem, size = 0x2000, scoped, tag = 'output window, operand 0, single buffered']
    %11 = vsyncpa [#allocation3], 0
    %12 = vsyncpa [#allocation6], 0
    %13 = vsyncpa [#allocation4], 0
    // Predicated region
    $region2: #{tpu_custom_call.1} parent=1 // pred_check
      _
    $region3: #{tpu_custom_call.1} parent=1 // pred_check_branch
      %15 = sbr.rel (0) target = $region5
    $region4: #{tpu_custom_call.1} parent=1 // pred_region
      %s17 = ssub.s32 512, 512
      %18 = vsyncadd [#allocation3], %s17
      %s20 = sshll.u32 [#allocation2], 4
      %s21 = int_to_ptr.vmem [resolvable:$true] %s20
      %23 = dma.hbm_to_vmem [thread:$0]  %s0, 512, %s21, [#allocation3]
    $region5: #{tpu_custom_call.1} parent=1 // pred_fallthru
      _
    // Predicated region
    $region6: #{tpu_custom_call.1} parent=1 // pred_check
      _
    $region7: #{tpu_custom_call.1} parent=1 // pred_check_branch
      %25 = sbr.rel (0) target = $region9
    $region8: #{tpu_custom_call.1} parent=1 // pred_region
      _
    $region9: #{tpu_custom_call.1} parent=1 // pred_fallthru
      _
    // Predicated region
    $region10: #{tpu_custom_call.1} parent=1 // pred_check
      _
    $region11: #{tpu_custom_call.1} parent=1 // pred_check_branch
      %27 = sbr.rel (0) target = $region13
    $region12: #{tpu_custom_call.1} parent=1 // pred_region
      %s29 = ssub.s32 8192, 8192
      %30 = vsyncadd [#allocation6], %s29
      %s31 = sshll.u32 [#allocation5], 4
      %s32 = int_to_ptr.vmem [resolvable:$true] %s31
      %37 = dma.hbm_to_vmem [thread:$0]  %s2, 8192, %s32, [#allocation6], 64, 64, 4
    $region13: #{tpu_custom_call.1} parent=1 // pred_fallthru
      _
    // Predicated region
    $region14: #{tpu_custom_call.1} parent=1 // pred_check
      _
    $region15: #{tpu_custom_call.1} parent=1 // pred_check_branch
      %39 = sbr.rel (0) target = $region17
    $region16: #{tpu_custom_call.1} parent=1 // pred_region
      _
    $region17: #{tpu_custom_call.1} parent=1 // pred_fallthru
      _
    // Predicated region
    $region18: #{tpu_custom_call.1} parent=1 // pred_check
      _
    $region19: #{tpu_custom_call.1} parent=1 // pred_check_branch
      %41 = sbr.rel (0) target = $region21
    $region20: #{tpu_custom_call.1} parent=1 // pred_region
      %s43 = ssub.s32 1024, 1024
      %44 = vsyncadd [#allocation6], %s43
      %s45 = sshll.u32 [#allocation7], 4
      %s46 = int_to_ptr.vmem [resolvable:$true] %s45
      %51 = dma.hbm_to_vmem [thread:$0]  %s4, 1024, %s46, [#allocation6], 64, 64, 4
    $region21: #{tpu_custom_call.1} parent=1 // pred_fallthru
      _
    // Predicated region
    $region22: #{tpu_custom_call.1} parent=1 // pred_check
      _
    $region23: #{tpu_custom_call.1} parent=1 // pred_check_branch
      %53 = sbr.rel (0) target = $region25
    $region24: #{tpu_custom_call.1} parent=1 // pred_region
      _
    $region25: #{tpu_custom_call.1} parent=1 // pred_fallthru
      _
    // Predicated region
    $region26: #{tpu_custom_call.1} parent=1 // pred_check
      _
    $region27: #{tpu_custom_call.1} parent=1 // pred_check_branch
      %55 = sbr.rel (0) target = $region29
    $region28: #{tpu_custom_call.1} parent=1 // pred_region
      %56 = dma.done [#allocation3], 512
    $region29: #{tpu_custom_call.1} parent=1 // pred_fallthru
      _
    // Predicated region
    $region30: #{tpu_custom_call.1} parent=1 // pred_check
      _
    $region31: #{tpu_custom_call.1} parent=1 // pred_check_branch
      %58 = sbr.rel (0) target = $region33
    $region32: #{tpu_custom_call.1} parent=1 // pred_region
      %59 = dma.done [#allocation6], 8192
    $region33: #{tpu_custom_call.1} parent=1 // pred_fallthru
      _
    // Predicated region
    $region34: #{tpu_custom_call.1} parent=1 // pred_check
      _
    $region35: #{tpu_custom_call.1} parent=1 // pred_check_branch
      %61 = sbr.rel (0) target = $region37
    $region36: #{tpu_custom_call.1} parent=1 // pred_region
      %62 = dma.done [#allocation6], 1024
    $region37: #{tpu_custom_call.1} parent=1 // pred_fallthru
      _
    %v64 = vld [vmem:[#allocation2] sm:$0xff]
    %v65 = vld [vmem:[#allocation2 + $0x8] sm:$0xff]
    %v66 = vld [vmem:[#allocation2 + $0x10] sm:$0xff]
    %v67 = vld [vmem:[#allocation2 + $0x18] sm:$0xff]
    %v68 = vld [vmem:[#allocation5] sm:$0xf]
    %v69 = vld [vmem:[#allocation5 + $0x4] sm:$0xf]
    %v70 = vld [vmem:[#allocation5 + $0x8] sm:$0xf]
    %v71 = vld [vmem:[#allocation5 + $0xc] sm:$0xf]
    %v72 = vld [vmem:[#allocation5 + $0x10] sm:$0xf]
    %v73 = vld [vmem:[#allocation5 + $0x14] sm:$0xf]
    %v74 = vld [vmem:[#allocation5 + $0x18] sm:$0xf]
    %v75 = vld [vmem:[#allocation5 + $0x1c] sm:$0xf]
    %v76 = vld [vmem:[#allocation5 + $0x20] sm:$0xf]
    %v77 = vld [vmem:[#allocation5 + $0x24] sm:$0xf]
    %v78 = vld [vmem:[#allocation5 + $0x28] sm:$0xf]
    %v79 = vld [vmem:[#allocation5 + $0x2c] sm:$0xf]
    %v80 = vld [vmem:[#allocation5 + $0x30] sm:$0xf]
    %v81 = vld [vmem:[#allocation5 + $0x34] sm:$0xf]
    %v82 = vld [vmem:[#allocation5 + $0x38] sm:$0xf]
    %v83 = vld [vmem:[#allocation5 + $0x3c] sm:$0xf]
    %v84 = vld [vmem:[#allocation5 + $0x40] sm:$0xf]
    %v85 = vld [vmem:[#allocation5 + $0x44] sm:$0xf]
    %v86 = vld [vmem:[#allocation5 + $0x48] sm:$0xf]
    %v87 = vld [vmem:[#allocation5 + $0x4c] sm:$0xf]
    %v88 = vld [vmem:[#allocation5 + $0x50] sm:$0xf]
    %v89 = vld [vmem:[#allocation5 + $0x54] sm:$0xf]
    %v90 = vld [vmem:[#allocation5 + $0x58] sm:$0xf]
    %v91 = vld [vmem:[#allocation5 + $0x5c] sm:$0xf]
    %v92 = vld [vmem:[#allocation5 + $0x60] sm:$0xf]
    %v93 = vld [vmem:[#allocation5 + $0x64] sm:$0xf]
    %v94 = vld [vmem:[#allocation5 + $0x68] sm:$0xf]
    %v95 = vld [vmem:[#allocation5 + $0x6c] sm:$0xf]
    %v96 = vld [vmem:[#allocation5 + $0x70] sm:$0xf]
    %v97 = vld [vmem:[#allocation5 + $0x74] sm:$0xf]
    %v98 = vld [vmem:[#allocation5 + $0x78] sm:$0xf]
    %v99 = vld [vmem:[#allocation5 + $0x7c] sm:$0xf]
    %v100 = vld [vmem:[#allocation5 + $0x80] sm:$0xf]
    %v101 = vld [vmem:[#allocation5 + $0x84] sm:$0xf]
    %v102 = vld [vmem:[#allocation5 + $0x88] sm:$0xf]
    %v103 = vld [vmem:[#allocation5 + $0x8c] sm:$0xf]
    %v104 = vld [vmem:[#allocation5 + $0x90] sm:$0xf]
    %v105 = vld [vmem:[#allocation5 + $0x94] sm:$0xf]
    %v106 = vld [vmem:[#allocation5 + $0x98] sm:$0xf]
    %v107 = vld [vmem:[#allocation5 + $0x9c] sm:$0xf]
    %v108 = vld [vmem:[#allocation5 + $0xa0] sm:$0xf]
    %v109 = vld [vmem:[#allocation5 + $0xa4] sm:$0xf]
    %v110 = vld [vmem:[#allocation5 + $0xa8] sm:$0xf]
    %v111 = vld [vmem:[#allocation5 + $0xac] sm:$0xf]
    %v112 = vld [vmem:[#allocation5 + $0xb0] sm:$0xf]
    %v113 = vld [vmem:[#allocation5 + $0xb4] sm:$0xf]
    %v114 = vld [vmem:[#allocation5 + $0xb8] sm:$0xf]
    %v115 = vld [vmem:[#allocation5 + $0xbc] sm:$0xf]
    %v116 = vld [vmem:[#allocation5 + $0xc0] sm:$0xf]
    %v117 = vld [vmem:[#allocation5 + $0xc4] sm:$0xf]
    %v118 = vld [vmem:[#allocation5 + $0xc8] sm:$0xf]
    %v119 = vld [vmem:[#allocation5 + $0xcc] sm:$0xf]
    %v120 = vld [vmem:[#allocation5 + $0xd0] sm:$0xf]
    %v121 = vld [vmem:[#allocation5 + $0xd4] sm:$0xf]
    %v122 = vld [vmem:[#allocation5 + $0xd8] sm:$0xf]
    %v123 = vld [vmem:[#allocation5 + $0xdc] sm:$0xf]
    %v124 = vld [vmem:[#allocation5 + $0xe0] sm:$0xf]
    %v125 = vld [vmem:[#allocation5 + $0xe4] sm:$0xf]
    %v126 = vld [vmem:[#allocation5 + $0xe8] sm:$0xf]
    %v127 = vld [vmem:[#allocation5 + $0xec] sm:$0xf]
    %v128 = vld [vmem:[#allocation5 + $0xf0] sm:$0xf]
    %v129 = vld [vmem:[#allocation5 + $0xf4] sm:$0xf]
    %v130 = vld [vmem:[#allocation5 + $0xf8] sm:$0xf]
    %v131 = vld [vmem:[#allocation5 + $0xfc] sm:$0xf]
    %v132 = vld [vmem:[#allocation5 + $0x100] sm:$0xf]
    %v133 = vld [vmem:[#allocation5 + $0x104] sm:$0xf]
    %v134 = vld [vmem:[#allocation5 + $0x108] sm:$0xf]
    %v135 = vld [vmem:[#allocation5 + $0x10c] sm:$0xf]
    %v136 = vld [vmem:[#allocation5 + $0x110] sm:$0xf]
    %v137 = vld [vmem:[#allocation5 + $0x114] sm:$0xf]
    %v138 = vld [vmem:[#allocation5 + $0x118] sm:$0xf]
    %v139 = vld [vmem:[#allocation5 + $0x11c] sm:$0xf]
    %v140 = vld [vmem:[#allocation5 + $0x120] sm:$0xf]
    %v141 = vld [vmem:[#allocation5 + $0x124] sm:$0xf]
    %v142 = vld [vmem:[#allocation5 + $0x128] sm:$0xf]
    %v143 = vld [vmem:[#allocation5 + $0x12c] sm:$0xf]
    %v144 = vld [vmem:[#allocation5 + $0x130] sm:$0xf]
    %v145 = vld [vmem:[#allocation5 + $0x134] sm:$0xf]
    %v146 = vld [vmem:[#allocation5 + $0x138] sm:$0xf]
    %v147 = vld [vmem:[#allocation5 + $0x13c] sm:$0xf]
    %v148 = vld [vmem:[#allocation5 + $0x140] sm:$0xf]
    %v149 = vld [vmem:[#allocation5 + $0x144] sm:$0xf]
    %v150 = vld [vmem:[#allocation5 + $0x148] sm:$0xf]
    %v151 = vld [vmem:[#allocation5 + $0x14c] sm:$0xf]
    %v152 = vld [vmem:[#allocation5 + $0x150] sm:$0xf]
    %v153 = vld [vmem:[#allocation5 + $0x154] sm:$0xf]
    %v154 = vld [vmem:[#allocation5 + $0x158] sm:$0xf]
    %v155 = vld [vmem:[#allocation5 + $0x15c] sm:$0xf]
    %v156 = vld [vmem:[#allocation5 + $0x160] sm:$0xf]
    %v157 = vld [vmem:[#allocation5 + $0x164] sm:$0xf]
    %v158 = vld [vmem:[#allocation5 + $0x168] sm:$0xf]
    %v159 = vld [vmem:[#allocation5 + $0x16c] sm:$0xf]
    %v160 = vld [vmem:[#allocation5 + $0x170] sm:$0xf]
    %v161 = vld [vmem:[#allocation5 + $0x174] sm:$0xf]
    %v162 = vld [vmem:[#allocation5 + $0x178] sm:$0xf]
    %v163 = vld [vmem:[#allocation5 + $0x17c] sm:$0xf]
    %v164 = vld [vmem:[#allocation5 + $0x180] sm:$0xf]
    %v165 = vld [vmem:[#allocation5 + $0x184] sm:$0xf]
    %v166 = vld [vmem:[#allocation5 + $0x188] sm:$0xf]
    %v167 = vld [vmem:[#allocation5 + $0x18c] sm:$0xf]
    %v168 = vld [vmem:[#allocation5 + $0x190] sm:$0xf]
    %v169 = vld [vmem:[#allocation5 + $0x194] sm:$0xf]
    %v170 = vld [vmem:[#allocation5 + $0x198] sm:$0xf]
    %v171 = vld [vmem:[#allocation5 + $0x19c] sm:$0xf]
    %v172 = vld [vmem:[#allocation5 + $0x1a0] sm:$0xf]
    %v173 = vld [vmem:[#allocation5 + $0x1a4] sm:$0xf]
    %v174 = vld [vmem:[#allocation5 + $0x1a8] sm:$0xf]
    %v175 = vld [vmem:[#allocation5 + $0x1ac] sm:$0xf]
    %v176 = vld [vmem:[#allocation5 + $0x1b0] sm:$0xf]
    %v177 = vld [vmem:[#allocation5 + $0x1b4] sm:$0xf]
    %v178 = vld [vmem:[#allocation5 + $0x1b8] sm:$0xf]
    %v179 = vld [vmem:[#allocation5 + $0x1bc] sm:$0xf]
    %v180 = vld [vmem:[#allocation5 + $0x1c0] sm:$0xf]
    %v181 = vld [vmem:[#allocation5 + $0x1c4] sm:$0xf]
    %v182 = vld [vmem:[#allocation5 + $0x1c8] sm:$0xf]
    %v183 = vld [vmem:[#allocation5 + $0x1cc] sm:$0xf]
    %v184 = vld [vmem:[#allocation5 + $0x1d0] sm:$0xf]
    %v185 = vld [vmem:[#allocation5 + $0x1d4] sm:$0xf]
    %v186 = vld [vmem:[#allocation5 + $0x1d8] sm:$0xf]
    %v187 = vld [vmem:[#allocation5 + $0x1dc] sm:$0xf]
    %v188 = vld [vmem:[#allocation5 + $0x1e0] sm:$0xf]
    %v189 = vld [vmem:[#allocation5 + $0x1e4] sm:$0xf]
    %v190 = vld [vmem:[#allocation5 + $0x1e8] sm:$0xf]
    %v191 = vld [vmem:[#allocation5 + $0x1ec] sm:$0xf]
    %v192 = vld [vmem:[#allocation5 + $0x1f0] sm:$0xf]
    %v193 = vld [vmem:[#allocation5 + $0x1f4] sm:$0xf]
    %v194 = vld [vmem:[#allocation5 + $0x1f8] sm:$0xf]
    %v195 = vld [vmem:[#allocation5 + $0x1fc] sm:$0xf]
    %v200 = vunpack.c.l.b16 %v64
    %v201 = vunpack.c.h.b16 %v64
    %v202 = vunpack.c.l.b16 %v65
    %v203 = vunpack.c.h.b16 %v65
    %v204 = vunpack.c.l.b16 %v66
    %v205 = vunpack.c.h.b16 %v66
    %v206 = vunpack.c.l.b16 %v67
    %v207 = vunpack.c.h.b16 %v67
    %v208 = vpack.c.b16 %v200, %v200
    %v209 = vpack.c.b16 %v201, %v201
    %v210 = vpack.c.b16 %v202, %v202
    %v211 = vpack.c.b16 %v203, %v203
    %v212 = vpack.c.b16 %v204, %v204
    %v213 = vpack.c.b16 %v205, %v205
    %v214 = vpack.c.b16 %v206, %v206
    %v215 = vpack.c.b16 %v207, %v207
    %v352 = vunpack.c.l.b16 %v68
    %v353 = vunpack.c.l.b16 %v69
    %v354 = vunpack.c.l.b16 %v70
    %v355 = vunpack.c.l.b16 %v71
    %v356 = vunpack.c.l.b16 %v72
    %v357 = vunpack.c.l.b16 %v73
    %v358 = vunpack.c.l.b16 %v74
    %v359 = vunpack.c.l.b16 %v75
    %v360 = vunpack.c.l.b16 %v76
    %v361 = vunpack.c.l.b16 %v77
    %v362 = vunpack.c.l.b16 %v78
    %v363 = vunpack.c.l.b16 %v79
    %v364 = vunpack.c.l.b16 %v80
    %v365 = vunpack.c.l.b16 %v81
    %v366 = vunpack.c.l.b16 %v82
    %v367 = vunpack.c.l.b16 %v83
    %v368 = vunpack.c.l.b16 %v84
    %v369 = vunpack.c.l.b16 %v85
    %v370 = vunpack.c.l.b16 %v86
    %v371 = vunpack.c.l.b16 %v87
    %v372 = vunpack.c.l.b16 %v88
    %v373 = vunpack.c.l.b16 %v89
    %v374 = vunpack.c.l.b16 %v90
    %v375 = vunpack.c.l.b16 %v91
    %v376 = vunpack.c.l.b16 %v92
    %v377 = vunpack.c.l.b16 %v93
    %v378 = vunpack.c.l.b16 %v94
    %v379 = vunpack.c.l.b16 %v95
    %v380 = vunpack.c.l.b16 %v96
    %v381 = vunpack.c.l.b16 %v97
    %v382 = vunpack.c.l.b16 %v98
    %v383 = vunpack.c.l.b16 %v99
    %v384 = vunpack.c.l.b16 %v100
    %v385 = vunpack.c.l.b16 %v101
    %v386 = vunpack.c.l.b16 %v102
    %v387 = vunpack.c.l.b16 %v103
    %v388 = vunpack.c.l.b16 %v104
    %v389 = vunpack.c.l.b16 %v105
    %v390 = vunpack.c.l.b16 %v106
    %v391 = vunpack.c.l.b16 %v107
    %v392 = vunpack.c.l.b16 %v108
    %v393 = vunpack.c.l.b16 %v109
    %v394 = vunpack.c.l.b16 %v110
    %v395 = vunpack.c.l.b16 %v111
    %v396 = vunpack.c.l.b16 %v112
    %v397 = vunpack.c.l.b16 %v113
    %v398 = vunpack.c.l.b16 %v114
    %v399 = vunpack.c.l.b16 %v115
    %v400 = vunpack.c.l.b16 %v116
    %v401 = vunpack.c.l.b16 %v117
    %v402 = vunpack.c.l.b16 %v118
    %v403 = vunpack.c.l.b16 %v119
    %v404 = vunpack.c.l.b16 %v120
    %v405 = vunpack.c.l.b16 %v121
    %v406 = vunpack.c.l.b16 %v122
    %v407 = vunpack.c.l.b16 %v123
    %v408 = vunpack.c.l.b16 %v124
    %v409 = vunpack.c.l.b16 %v125
    %v410 = vunpack.c.l.b16 %v126
    %v411 = vunpack.c.l.b16 %v127
    %v412 = vunpack.c.l.b16 %v128
    %v413 = vunpack.c.l.b16 %v129
    %v414 = vunpack.c.l.b16 %v130
    %v415 = vunpack.c.l.b16 %v131
    %v416 = vunpack.c.l.b16 %v132
    %v417 = vunpack.c.l.b16 %v133
    %v418 = vunpack.c.l.b16 %v134
    %v419 = vunpack.c.l.b16 %v135
    %v420 = vunpack.c.l.b16 %v136
    %v421 = vunpack.c.l.b16 %v137
    %v422 = vunpack.c.l.b16 %v138
    %v423 = vunpack.c.l.b16 %v139
    %v424 = vunpack.c.l.b16 %v140
    %v425 = vunpack.c.l.b16 %v141
    %v426 = vunpack.c.l.b16 %v142
    %v427 = vunpack.c.l.b16 %v143
    %v428 = vunpack.c.l.b16 %v144
    %v429 = vunpack.c.l.b16 %v145
    %v430 = vunpack.c.l.b16 %v146
    %v431 = vunpack.c.l.b16 %v147
    %v432 = vunpack.c.l.b16 %v148
    %v433 = vunpack.c.l.b16 %v149
    %v434 = vunpack.c.l.b16 %v150
    %v435 = vunpack.c.l.b16 %v151
    %v436 = vunpack.c.l.b16 %v152
    %v437 = vunpack.c.l.b16 %v153
    %v438 = vunpack.c.l.b16 %v154
    %v439 = vunpack.c.l.b16 %v155
    %v440 = vunpack.c.l.b16 %v156
    %v441 = vunpack.c.l.b16 %v157
    %v442 = vunpack.c.l.b16 %v158
    %v443 = vunpack.c.l.b16 %v159
    %v444 = vunpack.c.l.b16 %v160
    %v445 = vunpack.c.l.b16 %v161
    %v446 = vunpack.c.l.b16 %v162
    %v447 = vunpack.c.l.b16 %v163
    %v448 = vunpack.c.l.b16 %v164
    %v449 = vunpack.c.l.b16 %v165
    %v450 = vunpack.c.l.b16 %v166
    %v451 = vunpack.c.l.b16 %v167
    %v452 = vunpack.c.l.b16 %v168
    %v453 = vunpack.c.l.b16 %v169
    %v454 = vunpack.c.l.b16 %v170
    %v455 = vunpack.c.l.b16 %v171
    %v456 = vunpack.c.l.b16 %v172
    %v457 = vunpack.c.l.b16 %v173
    %v458 = vunpack.c.l.b16 %v174
    %v459 = vunpack.c.l.b16 %v175
    %v460 = vunpack.c.l.b16 %v176
    %v461 = vunpack.c.l.b16 %v177
    %v462 = vunpack.c.l.b16 %v178
    %v463 = vunpack.c.l.b16 %v179
    %v464 = vunpack.c.l.b16 %v180
    %v465 = vunpack.c.l.b16 %v181
    %v466 = vunpack.c.l.b16 %v182
    %v467 = vunpack.c.l.b16 %v183
    %v468 = vunpack.c.l.b16 %v184
    %v469 = vunpack.c.l.b16 %v185
    %v470 = vunpack.c.l.b16 %v186
    %v471 = vunpack.c.l.b16 %v187
    %v472 = vunpack.c.l.b16 %v188
    %v473 = vunpack.c.l.b16 %v189
    %v474 = vunpack.c.l.b16 %v190
    %v475 = vunpack.c.l.b16 %v191
    %v476 = vunpack.c.l.b16 %v192
    %v477 = vunpack.c.l.b16 %v193
    %v478 = vunpack.c.l.b16 %v194
    %v479 = vunpack.c.l.b16 %v195
    %v480 = vpack.c.b16 %v353, %v352
    %v481 = vpack.c.b16 %v355, %v354
    %v482 = vpack.c.b16 %v357, %v356
    %v483 = vpack.c.b16 %v359, %v358
    %v484 = vpack.c.b16 %v361, %v360
    %v485 = vpack.c.b16 %v363, %v362
    %v486 = vpack.c.b16 %v365, %v364
    %v487 = vpack.c.b16 %v367, %v366
    %v488 = vpack.c.b16 %v369, %v368
    %v489 = vpack.c.b16 %v371, %v370
    %v490 = vpack.c.b16 %v373, %v372
    %v491 = vpack.c.b16 %v375, %v374
    %v492 = vpack.c.b16 %v377, %v376
    %v493 = vpack.c.b16 %v379, %v378
    %v494 = vpack.c.b16 %v381, %v380
    %v495 = vpack.c.b16 %v383, %v382
    %v496 = vpack.c.b16 %v385, %v384
    %v497 = vpack.c.b16 %v387, %v386
    %v498 = vpack.c.b16 %v389, %v388
    %v499 = vpack.c.b16 %v391, %v390
    %v500 = vpack.c.b16 %v393, %v392
    %v501 = vpack.c.b16 %v395, %v394
    %v502 = vpack.c.b16 %v397, %v396
    %v503 = vpack.c.b16 %v399, %v398
    %v504 = vpack.c.b16 %v401, %v400
    %v505 = vpack.c.b16 %v403, %v402
    %v506 = vpack.c.b16 %v405, %v404
    %v507 = vpack.c.b16 %v407, %v406
    %v508 = vpack.c.b16 %v409, %v408
    %v509 = vpack.c.b16 %v411, %v410
    %v510 = vpack.c.b16 %v413, %v412
    %v511 = vpack.c.b16 %v415, %v414
    %v512 = vpack.c.b16 %v417, %v416
    %v513 = vpack.c.b16 %v419, %v418
    %v514 = vpack.c.b16 %v421, %v420
    %v515 = vpack.c.b16 %v423, %v422
    %v516 = vpack.c.b16 %v425, %v424
    %v517 = vpack.c.b16 %v427, %v426
    %v518 = vpack.c.b16 %v429, %v428
    %v519 = vpack.c.b16 %v431, %v430
    %v520 = vpack.c.b16 %v433, %v432
    %v521 = vpack.c.b16 %v435, %v434
    %v522 = vpack.c.b16 %v437, %v436
    %v523 = vpack.c.b16 %v439, %v438
    %v524 = vpack.c.b16 %v441, %v440
    %v525 = vpack.c.b16 %v443, %v442
    %v526 = vpack.c.b16 %v445, %v444
    %v527 = vpack.c.b16 %v447, %v446
    %v528 = vpack.c.b16 %v449, %v448
    %v529 = vpack.c.b16 %v451, %v450
    %v530 = vpack.c.b16 %v453, %v452
    %v531 = vpack.c.b16 %v455, %v454
    %v532 = vpack.c.b16 %v457, %v456
    %v533 = vpack.c.b16 %v459, %v458
    %v534 = vpack.c.b16 %v461, %v460
    %v535 = vpack.c.b16 %v463, %v462
    %v536 = vpack.c.b16 %v465, %v464
    %v537 = vpack.c.b16 %v467, %v466
    %v538 = vpack.c.b16 %v469, %v468
    %v539 = vpack.c.b16 %v471, %v470
    %v540 = vpack.c.b16 %v473, %v472
    %v541 = vpack.c.b16 %v475, %v474
    %v542 = vpack.c.b16 %v477, %v476
    %v543 = vpack.c.b16 %v479, %v478
    %608 = vmatprep.subr.bf16.mxu0 0
    %609 = vmatpush1.bf16.msra.mxu0 %v480
    %610 = vmatprep.subr.bf16.mxu0 0
    %611 = vmatpush1.bf16.msra.mxu0 %v481
    %612 = vmatprep.subr.bf16.mxu0 0
    %613 = vmatpush1.bf16.msra.mxu0 %v482
    %614 = vmatprep.subr.bf16.mxu0 0
    %615 = vmatpush1.bf16.msra.mxu0 %v483
    %616 = vmatprep.subr.bf16.mxu0 0
    %617 = vmatpush1.bf16.msra.mxu0 %v484
    %618 = vmatprep.subr.bf16.mxu0 0
    %619 = vmatpush1.bf16.msra.mxu0 %v485
    %620 = vmatprep.subr.bf16.mxu0 0
    %621 = vmatpush1.bf16.msra.mxu0 %v486
    %622 = vmatprep.subr.bf16.mxu0 0
    %623 = vmatpush1.bf16.msra.mxu0 %v487
    %624 = vmatprep.subr.bf16.mxu0 0
    %625 = vmatpush1.bf16.msra.mxu0 %v488
    %626 = vmatprep.subr.bf16.mxu0 0
    %627 = vmatpush1.bf16.msra.mxu0 %v489
    %628 = vmatprep.subr.bf16.mxu0 0
    %629 = vmatpush1.bf16.msra.mxu0 %v490
    %630 = vmatprep.subr.bf16.mxu0 0
    %631 = vmatpush1.bf16.msra.mxu0 %v491
    %632 = vmatprep.subr.bf16.mxu0 0
    %633 = vmatpush1.bf16.msra.mxu0 %v492
    %634 = vmatprep.subr.bf16.mxu0 0
    %635 = vmatpush1.bf16.msra.mxu0 %v493
    %636 = vmatprep.subr.bf16.mxu0 0
    %637 = vmatpush1.bf16.msra.mxu0 %v494
    %638 = vmatprep.subr.bf16.mxu0 0
    %639 = vmatpush1.bf16.msra.mxu0 %v495
    %640 = vmatprep.mubr.bf16.mxu0 %v209
    %641 = vmatmul.mubr.bf16.gmra.mrb[0].mxu0 %v208
    %v642 = vpop.f32.mrb[0].mxu0
    %v643 = vadd.f32 0.0, %v642
    %v644 = vpop.f32.mrb[0].mxu0
    %v645 = vpop.f32.mrb[0].mxu0
    %v646 = vpop.f32.mrb[0].mxu0
    %647 = vdwg.mxu0
    %648 = vmatprep.subr.bf16.mxu0 0
    %649 = vmatpush1.bf16.msra.mxu0 %v496
    %650 = vmatprep.subr.bf16.mxu0 0
    %651 = vmatpush1.bf16.msra.mxu0 %v497
    %652 = vmatprep.subr.bf16.mxu0 0
    %653 = vmatpush1.bf16.msra.mxu0 %v498
    %654 = vmatprep.subr.bf16.mxu0 0
    %655 = vmatpush1.bf16.msra.mxu0 %v499
    %656 = vmatprep.subr.bf16.mxu0 0
    %657 = vmatpush1.bf16.msra.mxu0 %v500
    %658 = vmatprep.subr.bf16.mxu0 0
    %659 = vmatpush1.bf16.msra.mxu0 %v501
    %660 = vmatprep.subr.bf16.mxu0 0
    %661 = vmatpush1.bf16.msra.mxu0 %v502
    %662 = vmatprep.subr.bf16.mxu0 0
    %663 = vmatpush1.bf16.msra.mxu0 %v503
    %664 = vmatprep.subr.bf16.mxu0 0
    %665 = vmatpush1.bf16.msra.mxu0 %v504
    %666 = vmatprep.subr.bf16.mxu0 0
    %667 = vmatpush1.bf16.msra.mxu0 %v505
    %668 = vmatprep.subr.bf16.mxu0 0
    %669 = vmatpush1.bf16.msra.mxu0 %v506
    %670 = vmatprep.subr.bf16.mxu0 0
    %671 = vmatpush1.bf16.msra.mxu0 %v507
    %672 = vmatprep.subr.bf16.mxu0 0
    %673 = vmatpush1.bf16.msra.mxu0 %v508
    %674 = vmatprep.subr.bf16.mxu0 0
    %675 = vmatpush1.bf16.msra.mxu0 %v509
    %676 = vmatprep.subr.bf16.mxu0 0
    %677 = vmatpush1.bf16.msra.mxu0 %v510
    %678 = vmatprep.subr.bf16.mxu0 0
    %679 = vmatpush1.bf16.msra.mxu0 %v511
    %680 = vmatprep.mubr.bf16.mxu0 %v211
    %681 = vmatmul.mubr.bf16.gmra.mrb[0].mxu0 %v210
    %v682 = vpop.f32.mrb[0].mxu0
    %v683 = vadd.f32 %v643, %v682
    %v684 = vpop.f32.mrb[0].mxu0
    %v685 = vpop.f32.mrb[0].mxu0
    %v686 = vpop.f32.mrb[0].mxu0
    %687 = vdwg.mxu0
    %688 = vmatprep.subr.bf16.mxu0 0
    %689 = vmatpush1.bf16.msra.mxu0 %v512
    %690 = vmatprep.subr.bf16.mxu0 0
    %691 = vmatpush1.bf16.msra.mxu0 %v513
    %692 = vmatprep.subr.bf16.mxu0 0
    %693 = vmatpush1.bf16.msra.mxu0 %v514
    %694 = vmatprep.subr.bf16.mxu0 0
    %695 = vmatpush1.bf16.msra.mxu0 %v515
    %696 = vmatprep.subr.bf16.mxu0 0
    %697 = vmatpush1.bf16.msra.mxu0 %v516
    %698 = vmatprep.subr.bf16.mxu0 0
    %699 = vmatpush1.bf16.msra.mxu0 %v517
    %700 = vmatprep.subr.bf16.mxu0 0
    %701 = vmatpush1.bf16.msra.mxu0 %v518
    %702 = vmatprep.subr.bf16.mxu0 0
    %703 = vmatpush1.bf16.msra.mxu0 %v519
    %704 = vmatprep.subr.bf16.mxu0 0
    %705 = vmatpush1.bf16.msra.mxu0 %v520
    %706 = vmatprep.subr.bf16.mxu0 0
    %707 = vmatpush1.bf16.msra.mxu0 %v521
    %708 = vmatprep.subr.bf16.mxu0 0
    %709 = vmatpush1.bf16.msra.mxu0 %v522
    %710 = vmatprep.subr.bf16.mxu0 0
    %711 = vmatpush1.bf16.msra.mxu0 %v523
    %712 = vmatprep.subr.bf16.mxu0 0
    %713 = vmatpush1.bf16.msra.mxu0 %v524
    %714 = vmatprep.subr.bf16.mxu0 0
    %715 = vmatpush1.bf16.msra.mxu0 %v525
    %716 = vmatprep.subr.bf16.mxu0 0
    %717 = vmatpush1.bf16.msra.mxu0 %v526
    %718 = vmatprep.subr.bf16.mxu0 0
    %719 = vmatpush1.bf16.msra.mxu0 %v527
    %720 = vmatprep.mubr.bf16.mxu0 %v213
    %721 = vmatmul.mubr.bf16.gmra.mrb[0].mxu0 %v212
    %v722 = vpop.f32.mrb[0].mxu0
    %v723 = vadd.f32 %v683, %v722
    %v724 = vpop.f32.mrb[0].mxu0
    %v725 = vpop.f32.mrb[0].mxu0
    %v726 = vpop.f32.mrb[0].mxu0
    %727 = vdwg.mxu0
    %728 = vmatprep.subr.bf16.mxu0 0
    %729 = vmatpush1.bf16.msra.mxu0 %v528
    %730 = vmatprep.subr.bf16.mxu0 0
    %731 = vmatpush1.bf16.msra.mxu0 %v529
    %732 = vmatprep.subr.bf16.mxu0 0
    %733 = vmatpush1.bf16.msra.mxu0 %v530
    %734 = vmatprep.subr.bf16.mxu0 0
    %735 = vmatpush1.bf16.msra.mxu0 %v531
    %736 = vmatprep.subr.bf16.mxu0 0
    %737 = vmatpush1.bf16.msra.mxu0 %v532
    %738 = vmatprep.subr.bf16.mxu0 0
    %739 = vmatpush1.bf16.msra.mxu0 %v533
    %740 = vmatprep.subr.bf16.mxu0 0
    %741 = vmatpush1.bf16.msra.mxu0 %v534
    %742 = vmatprep.subr.bf16.mxu0 0
    %743 = vmatpush1.bf16.msra.mxu0 %v535
    %744 = vmatprep.subr.bf16.mxu0 0
    %745 = vmatpush1.bf16.msra.mxu0 %v536
    %746 = vmatprep.subr.bf16.mxu0 0
    %747 = vmatpush1.bf16.msra.mxu0 %v537
    %748 = vmatprep.subr.bf16.mxu0 0
    %749 = vmatpush1.bf16.msra.mxu0 %v538
    %750 = vmatprep.subr.bf16.mxu0 0
    %751 = vmatpush1.bf16.msra.mxu0 %v539
    %752 = vmatprep.subr.bf16.mxu0 0
    %753 = vmatpush1.bf16.msra.mxu0 %v540
    %754 = vmatprep.subr.bf16.mxu0 0
    %755 = vmatpush1.bf16.msra.mxu0 %v541
    %756 = vmatprep.subr.bf16.mxu0 0
    %757 = vmatpush1.bf16.msra.mxu0 %v542
    %758 = vmatprep.subr.bf16.mxu0 0
    %759 = vmatpush1.bf16.msra.mxu0 %v543
    %760 = vmatprep.mubr.bf16.mxu0 %v215
    %761 = vmatmul.mubr.bf16.gmra.mrb[0].mxu0 %v214
    %v762 = vpop.f32.mrb[0].mxu0
    %v763 = vadd.f32 %v723, %v762
    %v764 = vpop.f32.mrb[0].mxu0
    %v765 = vpop.f32.mrb[0].mxu0
    %v766 = vpop.f32.mrb[0].mxu0
    %767 = vdwg.mxu0
    %v768 = vld [vmem:[%s1] sm:$0xff]
    %v769 = vld [vmem:[%s1 + $0x8] sm:$0xff]
    %v770 = vld [vmem:[%s3] sm:$0x1]
    %v772 = vlaneseq
    %v773 = vshrl.u32 %v772, 7
    %v774 = vsub.s32 0, %v773
    %v775 = vrot.slane %v770, %v774
    %vm777 = vcmask 64512
    %v779 = vsel %vm777, %v768, 0
    %v782 = vsel %vm777, %v769, 0
    %784 = vmatprep.subr.mxu0 0.0
    %785 = vmatpush1.msra.mxu0 %v763
    %786 = vmatprep.subr.mxu0 0.0
    %787 = vmatpush1.msra.mxu0 0.0
    %788 = vmatprep.subr.mxu0 0.0
    %789 = vmatpush1.msra.mxu0 0.0
    %790 = vmatprep.subr.mxu0 0.0
    %791 = vmatpush1.msra.mxu0 0.0
    %792 = vmatprep.subr.mxu0 0.0
    %793 = vmatpush1.msra.mxu0 0.0
    %794 = vmatprep.subr.mxu0 0.0
    %795 = vmatpush1.msra.mxu0 0.0
    %796 = vmatprep.subr.mxu0 0.0
    %797 = vmatpush1.msra.mxu0 0.0
    %798 = vmatprep.subr.mxu0 0.0
    %799 = vmatpush1.msra.mxu0 0.0
    %800 = vmatprep.subr.mxu0 0.0
    %801 = vmatpush1.msra.mxu0 0.0
    %802 = vmatprep.subr.mxu0 0.0
    %803 = vmatpush1.msra.mxu0 0.0
    %804 = vmatprep.subr.mxu0 0.0
    %805 = vmatpush1.msra.mxu0 0.0
    %806 = vmatprep.subr.mxu0 0.0
    %807 = vmatpush1.msra.mxu0 0.0
    %808 = vmatprep.subr.mxu0 0.0
    %809 = vmatpush1.msra.mxu0 0.0
    %810 = vmatprep.subr.mxu0 0.0
    %811 = vmatpush1.msra.mxu0 0.0
    %812 = vmatprep.subr.mxu0 0.0
    %813 = vmatpush1.msra.mxu0 0.0
    %814 = vmatprep.subr.mxu0 0.0
    %815 = vmatpush1.msra.mxu0 0.0
    %816 = vmatprep.subr.mxu0 0.0
    %817 = vmatpush1.msra.mxu0 0.0
    %818 = vmatprep.subr.mxu0 0.0
    %819 = vmatpush1.msra.mxu0 0.0
    %820 = vmatprep.subr.mxu0 0.0
    %821 = vmatpush1.msra.mxu0 0.0
    %822 = vmatprep.subr.mxu0 0.0
    %823 = vmatpush1.msra.mxu0 0.0
    %824 = vmatprep.subr.mxu0 0.0
    %825 = vmatpush1.msra.mxu0 0.0
    %826 = vmatprep.subr.mxu0 0.0
    %827 = vmatpush1.msra.mxu0 0.0
    %828 = vmatprep.subr.mxu0 0.0
    %829 = vmatpush1.msra.mxu0 0.0
    %830 = vmatprep.subr.mxu0 0.0
    %831 = vmatpush1.msra.mxu0 0.0
    %832 = vmatprep.subr.mxu0 0.0
    %833 = vmatpush1.msra.mxu0 0.0
    %834 = vmatprep.subr.mxu0 0.0
    %835 = vmatpush1.msra.mxu0 0.0
    %836 = vmatprep.subr.mxu0 0.0
    %837 = vmatpush1.msra.mxu0 0.0
    %838 = vmatprep.subr.mxu0 0.0
    %839 = vmatpush1.msra.mxu0 0.0
    %840 = vmatprep.subr.mxu0 0.0
    %841 = vmatpush1.msra.mxu0 0.0
    %842 = vmatprep.subr.mxu0 0.0
    %843 = vmatpush1.msra.mxu0 0.0
    %844 = vmatprep.subr.mxu0 0.0
    %845 = vmatpush1.msra.mxu0 0.0
    %846 = vmatprep.subr.mxu0 0.0
    %847 = vmatpush1.msra.mxu0 0.0
    %848 = vmatprep.mubr.f32.mxu0 0.0
    %849 = vmatmul.mubr.f32.gmra.mrb[0].mxu0 %v779
    %v850 = vpop.f32.mrb[0].mxu0
    %v851 = vadd.f32 %v775, %v850
    %v852 = vpop.f32.mrb[0].mxu0
    %853 = vmatprep.mubr.f32.mxu0 0.0
    %854 = vmatmul.mubr.f32.gmra.mrb[0].mxu0 %v782
    %v855 = vpop.f32.mrb[0].mxu0
    %v856 = vadd.f32 %v775, %v855
    %v857 = vpop.f32.mrb[0].mxu0
    %858 = vdwg.mxu0
    %v859 = vmax.f32 %v851, 0.0
    %v860 = vmax.f32 %v856, 0.0
    %v861 = vpack.c.bf16 %v860, %v859
    %v862 = vld [vmem:[#allocation7] sm:$0xf]
    %v863 = vld [vmem:[#allocation7 + $0x4] sm:$0xf]
    %v864 = vld [vmem:[#allocation7 + $0x8] sm:$0xf]
    %v865 = vld [vmem:[#allocation7 + $0xc] sm:$0xf]
    %v866 = vld [vmem:[#allocation7 + $0x10] sm:$0xf]
    %v867 = vld [vmem:[#allocation7 + $0x14] sm:$0xf]
    %v868 = vld [vmem:[#allocation7 + $0x18] sm:$0xf]
    %v869 = vld [vmem:[#allocation7 + $0x1c] sm:$0xf]
    %v870 = vld [vmem:[#allocation7 + $0x20] sm:$0xf]
    %v871 = vld [vmem:[#allocation7 + $0x24] sm:$0xf]
    %v872 = vld [vmem:[#allocation7 + $0x28] sm:$0xf]
    %v873 = vld [vmem:[#allocation7 + $0x2c] sm:$0xf]
    %v874 = vld [vmem:[#allocation7 + $0x30] sm:$0xf]
    %v875 = vld [vmem:[#allocation7 + $0x34] sm:$0xf]
    %v876 = vld [vmem:[#allocation7 + $0x38] sm:$0xf]
    %v877 = vld [vmem:[#allocation7 + $0x3c] sm:$0xf]
    %v878 = vld [vmem:[%s5] sm:$0x1]
    %v880 = vlaneseq
    %v881 = vshrl.u32 %v880, 7
    %v882 = vsub.s32 0, %v881
    %v883 = vrot.slane %v878, %v882
    %v901 = vunpack.c.l.b16 %v862
    %v902 = vunpack.c.l.b16 %v863
    %v903 = vunpack.c.l.b16 %v864
    %v904 = vunpack.c.l.b16 %v865
    %v905 = vunpack.c.l.b16 %v866
    %v906 = vunpack.c.l.b16 %v867
    %v907 = vunpack.c.l.b16 %v868
    %v908 = vunpack.c.l.b16 %v869
    %v909 = vunpack.c.l.b16 %v870
    %v910 = vunpack.c.l.b16 %v871
    %v911 = vunpack.c.l.b16 %v872
    %v912 = vunpack.c.l.b16 %v873
    %v913 = vunpack.c.l.b16 %v874
    %v914 = vunpack.c.l.b16 %v875
    %v915 = vunpack.c.l.b16 %v876
    %v916 = vunpack.c.l.b16 %v877
    %v917 = vpack.c.b16 %v902, %v901
    %v918 = vpack.c.b16 %v904, %v903
    %v919 = vpack.c.b16 %v906, %v905
    %v920 = vpack.c.b16 %v908, %v907
    %v921 = vpack.c.b16 %v910, %v909
    %v922 = vpack.c.b16 %v912, %v911
    %v923 = vpack.c.b16 %v914, %v913
    %v924 = vpack.c.b16 %v916, %v915
    %933 = vmatprep.subr.bf16.mxu0 0
    %934 = vmatpush1.bf16.msra.mxu0 %v917
    %935 = vmatprep.subr.bf16.mxu0 0
    %936 = vmatpush1.bf16.msra.mxu0 %v918
    %937 = vmatprep.subr.bf16.mxu0 0
    %938 = vmatpush1.bf16.msra.mxu0 %v919
    %939 = vmatprep.subr.bf16.mxu0 0
    %940 = vmatpush1.bf16.msra.mxu0 %v920
    %941 = vmatprep.subr.bf16.mxu0 0
    %942 = vmatpush1.bf16.msra.mxu0 %v921
    %943 = vmatprep.subr.bf16.mxu0 0
    %944 = vmatpush1.bf16.msra.mxu0 %v922
    %945 = vmatprep.subr.bf16.mxu0 0
    %946 = vmatpush1.bf16.msra.mxu0 %v923
    %947 = vmatprep.subr.bf16.mxu0 0
    %948 = vmatpush1.bf16.msra.mxu0 %v924
    %949 = vmatprep.subr.bf16.mxu0 0
    %950 = vmatpush1.bf16.msra.mxu0 0
    %951 = vmatprep.subr.bf16.mxu0 0
    %952 = vmatpush1.bf16.msra.mxu0 0
    %953 = vmatprep.subr.bf16.mxu0 0
    %954 = vmatpush1.bf16.msra.mxu0 0
    %955 = vmatprep.subr.bf16.mxu0 0
    %956 = vmatpush1.bf16.msra.mxu0 0
    %957 = vmatprep.subr.bf16.mxu0 0
    %958 = vmatpush1.bf16.msra.mxu0 0
    %959 = vmatprep.subr.bf16.mxu0 0
    %960 = vmatpush1.bf16.msra.mxu0 0
    %961 = vmatprep.subr.bf16.mxu0 0
    %962 = vmatpush1.bf16.msra.mxu0 0
    %963 = vmatprep.subr.bf16.mxu0 0
    %964 = vmatpush1.bf16.msra.mxu0 0
    %965 = vmatprep.mubr.bf16.mxu0 0
    %966 = vmatmul.mubr.bf16.gmra.mrb[0].mxu0 %v861
    %v967 = vpop.f32.mrb[0].mxu0
    %v968 = vadd.f32 %v883, %v967
    %v969 = vpop.f32.mrb[0].mxu0
    %v970 = vpop.f32.mrb[0].mxu0
    %v971 = vadd.f32 %v883, %v970
    %v972 = vpop.f32.mrb[0].mxu0
    %973 = vdwg.mxu0
    %974 = vst [vmem:[#allocation8] sm:$0xff] %v968
    %975 = vst [vmem:[#allocation8 + $0x8] sm:$0xff] %v971
    // Predicated region
    $region38: #{tpu_custom_call.1} parent=1 // pred_check
      _
    $region39: #{tpu_custom_call.1} parent=1 // pred_check_branch
      %977 = sbr.rel (0) target = $region41
    $region40: #{tpu_custom_call.1} parent=1 // pred_region
      %s979 = ssub.s32 256, 256
      %980 = vsyncadd [#allocation4], %s979
      %s981 = sshll.u32 [#allocation8], 4
      %s982 = int_to_ptr.vmem [resolvable:$true] %s981
      %987 = dma.vmem_to_hbm [thread:$0]  %s982, 256, %s6, [#allocation4], 128, 128, 8
    $region41: #{tpu_custom_call.1} parent=1 // pred_fallthru
      _
    // Predicated region
    $region42: #{tpu_custom_call.1} parent=1 // pred_check
      _
    $region43: #{tpu_custom_call.1} parent=1 // pred_check_branch
      %989 = sbr.rel (0) target = $region45
    $region44: #{tpu_custom_call.1} parent=1 // pred_region
      %990 = dma.done [#allocation4], 256
    $region45: #{tpu_custom_call.1} parent=1 // pred_fallthru
      _
    %991 = vsyncpa [#allocation3], 1
    %992 = vsyncpa [#allocation6], 1
    %993 = vsyncpa [#allocation4], 1

</llo_original>
